<compile_context>
chip_gen: v7x
topology: tpu7x:2x2x1
jax: 0.10.0
libtpu: 0.0.40
codegen_flags: <defaults>
</compile_context>

<pallas_src>
import jax
import jax.numpy as jnp
import numpy as np
from jax.experimental import pallas as pl
from jax.experimental.pallas import tpu as pltpu


def _pick_hw_tile(hw, max_tile=8192):
    """Largest HW tile that bounds VMEM: full HW if small, else a divisor
    of HW that is a multiple of 128 and <= max_tile."""
    if hw <= max_tile:
        return hw
    for t in range(max_tile - (max_tile % 128), 127, -128):
        if hw % t == 0:
            return t
    return hw  # fallback: full slab


def _reg_l1_kernel(ind_ref,      # VMEM (1, K)        int32
                   pred_ref,     # VMEM (C, HW_TILE)  pred dtype (native, no upcast)
                   mask_ref,     # VMEM (1, K)        f32 (0/1)
                   target_ref,   # VMEM (C, K)        target dtype
                   out_ref,      # VMEM (1, K)        f32 per-batch partial sums
                   acc_ref):     # VMEM scratch (C, K) f32 gathered accumulator
    h = pl.program_id(1)
    n_hw = pl.num_programs(1)
    _, tile_hw = pred_ref.shape
    K = ind_ref.shape[-1]

    @pl.when(h == 0)
    def _():
        acc_ref[...] = jnp.zeros_like(acc_ref)

    # One-hot MXU gather of the K requested spatial positions from this HW tile.
    # Each column of `onehot` has at most one 1, so the matmul is an exact gather
    # and partial results accumulate exactly across HW tiles.
    local_ids = jax.lax.broadcasted_iota(jnp.int32, (tile_hw, K), 0)  # (tile, K)
    wanted = ind_ref[...] - h * tile_hw                               # (1, K)
    onehot = (local_ids == wanted).astype(pred_ref.dtype)             # (tile, K)
    acc_ref[...] += jnp.dot(pred_ref[...], onehot,
                            preferred_element_type=jnp.float32)       # (C, K)

    @pl.when(h == n_hw - 1)
    def _():
        m = mask_ref[...]                                   # (1, K) f32
        t = target_ref[...].astype(jnp.float32)             # (C, K)
        diff = jnp.abs(acc_ref[...] - t) * m                # (C, K), K on lanes
        out_ref[...] = jnp.sum(diff, axis=0, keepdims=True)  # (1, K)


def reg_l1_loss(pred, mask, ind, target):
    B, C, H, W = pred.shape
    K = ind.shape[1]
    HW = H * W

    # Free / tiny wrapper glue (no transpose or cast of the big feature map):
    pred_r = pred.reshape(B, C, HW)                       # native NCHW, HW -> lanes
    target_t = jnp.transpose(target, (0, 2, 1))           # (B, C, K)   (tiny)
    mask_f = mask.astype(jnp.float32).reshape(B, 1, K)    # (B, 1, K)
    ind_r = ind.astype(jnp.int32).reshape(B, 1, K)        # (B, 1, K)

    tile_hw = _pick_hw_tile(HW)
    n_hw = HW // tile_hw

    partial = pl.pallas_call(
        _reg_l1_kernel,
        out_shape=jax.ShapeDtypeStruct((B, 1, K), jnp.float32),
        grid=(B, n_hw),
        in_specs=[
            pl.BlockSpec((None, 1, K), lambda b, h: (b, 0, 0)),        # ind
            pl.BlockSpec((None, C, tile_hw), lambda b, h: (b, 0, h)),  # pred
            pl.BlockSpec((None, 1, K), lambda b, h: (b, 0, 0)),        # mask
            pl.BlockSpec((None, C, K), lambda b, h: (b, 0, 0)),        # target
        ],
        out_specs=pl.BlockSpec((None, 1, K), lambda b, h: (b, 0, 0)),
        scratch_shapes=[pltpu.VMEM((C, K), jnp.float32)],
        compiler_params=pltpu.CompilerParams(
            dimension_semantics=("parallel", "arbitrary")),
    )(ind_r, pred_r, mask_f, target_t)

    # Tiny final reductions + denominator live in the wrapper (no kernel needed).
    num = jnp.sum(partial)
    den = jnp.sum(mask.astype(jnp.float32)) * jnp.float32(C) + jnp.float32(1e-4)
    return num / den


reg_l1_loss = jax.jit(reg_l1_loss)


def _reference_loss(pred, mask, ind, target):
    B, C, H, W = pred.shape
    K = ind.shape[1]
    pf = jnp.transpose(pred, (0, 2, 3, 1)).reshape(B, H * W, C)
    idx = jnp.broadcast_to(ind[:, :, None].astype(jnp.int32), (B, K, C))
    gathered = jnp.take_along_axis(pf, idx, axis=1)            # (B, K, C)
    m = jnp.broadcast_to(mask[:, :, None].astype(jnp.float32), (B, K, C))
    num = jnp.sum(jnp.abs(gathered * m - target * m))
    den = jnp.sum(m) + 1e-4
    return num / den


if __name__ == "__main__":
    key = jax.random.PRNGKey(0)
    k1, k2, k3, k4 = jax.random.split(key, 4)

    B, C, H, W, K = 2, 4, 16, 16, 8
    pred = jax.random.normal(k1, (B, C, H, W), dtype=jnp.float32)
    target = jax.random.normal(k2, (B, K, C), dtype=jnp.float32)
    ind = jax.random.randint(k3, (B, K), 0, H * W, dtype=jnp.int32)
    mask = (jax.random.uniform(k4, (B, K)) > 0.3).astype(jnp.float32)

    loss = reg_l1_loss(pred, mask, ind, target)
    loss = jax.block_until_ready(loss)

    ref = jax.block_until_ready(_reference_loss(pred, mask, ind, target))
    np.testing.assert_allclose(np.asarray(loss), np.asarray(ref),
                               rtol=1e-5, atol=1e-6)
    print("KERNEL_OK")
</pallas_src>

<mosaic_0001>
module attributes {stable_mosaic.version = 11 : i64} {
  func.func @_reg_l1_kernel(%arg0: i32, %arg1: i32, %arg2: memref<1x1x8xi32, #tpu.memory_space<vmem>>, %arg3: memref<1x4x256xf32, #tpu.memory_space<vmem>>, %arg4: memref<1x1x8xf32, #tpu.memory_space<vmem>>, %arg5: memref<1x4x8xf32, #tpu.memory_space<vmem>>, %arg6: memref<1x1x8xf32, #tpu.memory_space<vmem>>, %arg7: memref<4x8xf32, #tpu.memory_space<vmem>>) attributes {dimension_semantics = [#tpu.dimension_semantics<parallel>, #tpu.dimension_semantics<arbitrary>], iteration_bounds = array<i64: 2, 1>, scalar_prefetch = 0 : i64, scratch_operands = 1 : i64, tpu.core_type = #tpu.core_type<tc>, window_params = [{transform_indices = @transform_0, window_bounds = array<i64: 1, 1, 8>}, {transform_indices = @transform_1, window_bounds = array<i64: 1, 4, 256>}, {transform_indices = @transform_2, window_bounds = array<i64: 1, 1, 8>}, {transform_indices = @transform_3, window_bounds = array<i64: 1, 4, 8>}, {transform_indices = @transform_4, window_bounds = array<i64: 1, 1, 8>}]} {
    %c0_i32 = arith.constant 0 : i32
    %0 = arith.cmpi eq, %arg1, %c0_i32 : i32
    %1 = arith.extui %0 : i1 to i32
    %c0_i32_0 = arith.constant 0 : i32
    %2 = arith.cmpi ne, %1, %c0_i32_0 : i32
    scf.if %2 {
      %cst_12 = arith.constant 0.000000e+00 : f32
      %22 = vector.broadcast %cst_12 : f32 to vector<4x8xf32>
      %c0_13 = arith.constant 0 : index
      %c0_14 = arith.constant 0 : index
      %23 = vector.load %arg7[%c0_13, %c0_14] : memref<4x8xf32, #tpu.memory_space<vmem>>, vector<4x8xf32>
      tpu.vector_store %arg7[%c0_13, %c0_14], %22 {strides = array<i32>} : memref<4x8xf32, #tpu.memory_space<vmem>>, vector<4x8xf32>,
    } else {
    }
    %3 = tpu.iota {dimensions = array<i32: 0>} : vector<256x8xi32>
    %c0 = arith.constant 0 : index
    %c0_1 = arith.constant 0 : index
    %c0_2 = arith.constant 0 : index
    %4 = vector.load %arg2[%c0, %c0_1, %c0_2] : memref<1x1x8xi32, #tpu.memory_space<vmem>>, vector<1x1x8xi32>
    %5 = vector.shape_cast %4 : vector<1x1x8xi32> to vector<1x8xi32>
    %c256_i32 = arith.constant 256 : i32
    %6 = arith.muli %arg1, %c256_i32 : i32
    %7 = vector.broadcast %6 : i32 to vector<1x8xi32>
    %8 = arith.subi %5, %7 : vector<1x8xi32>
    %9 = vector.broadcast %8 : vector<1x8xi32> to vector<256x8xi32>
    %10 = arith.cmpi eq, %3, %9 : vector<256x8xi32>
    %11 = arith.extui %10 : vector<256x8xi1> to vector<256x8xi32>
    %12 = arith.sitofp %11 : vector<256x8xi32> to vector<256x8xf32>
    %c0_3 = arith.constant 0 : index
    %c0_4 = arith.constant 0 : index
    %13 = vector.load %arg7[%c0_3, %c0_4] : memref<4x8xf32, #tpu.memory_space<vmem>>, vector<4x8xf32>
    %c0_5 = arith.constant 0 : index
    %c0_6 = arith.constant 0 : index
    %c0_7 = arith.constant 0 : index
    %14 = vector.load %arg3[%c0_5, %c0_6, %c0_7] : memref<1x4x256xf32, #tpu.memory_space<vmem>>, vector<1x4x256xf32>
    %15 = vector.shape_cast %14 : vector<1x4x256xf32> to vector<4x256xf32>
    %cst = arith.constant dense<0.000000e+00> : vector<4x8xf32>
    %16 = tpu.matmul %15, %12, %cst {dimension_numbers = #tpu.dot_dimension_numbers<[1], [0], [0], [1], [0, 0, 1, 1], [], []>} : vector<4x256xf32>, vector<256x8xf32>, vector<4x8xf32> -> vector<4x8xf32>
    %17 = arith.addf %13, %16 : vector<4x8xf32>
    %c0_8 = arith.constant 0 : index
    %c0_9 = arith.constant 0 : index
    %18 = vector.load %arg7[%c0_8, %c0_9] : memref<4x8xf32, #tpu.memory_space<vmem>>, vector<4x8xf32>
    tpu.vector_store %arg7[%c0_8, %c0_9], %17 {strides = array<i32>} : memref<4x8xf32, #tpu.memory_space<vmem>>, vector<4x8xf32>,
    %c0_i32_10 = arith.constant 0 : i32
    %19 = arith.cmpi eq, %arg1, %c0_i32_10 : i32
    %20 = arith.extui %19 : i1 to i32
    %c0_i32_11 = arith.constant 0 : i32
    %21 = arith.cmpi ne, %20, %c0_i32_11 : i32
    scf.if %21 {
      %c0_12 = arith.constant 0 : index
      %c0_13 = arith.constant 0 : index
      %c0_14 = arith.constant 0 : index
      %22 = vector.load %arg4[%c0_12, %c0_13, %c0_14] : memref<1x1x8xf32, #tpu.memory_space<vmem>>, vector<1x1x8xf32>
      %23 = vector.shape_cast %22 : vector<1x1x8xf32> to vector<1x8xf32>
      %c0_15 = arith.constant 0 : index
      %c0_16 = arith.constant 0 : index
      %c0_17 = arith.constant 0 : index
      %24 = vector.load %arg5[%c0_15, %c0_16, %c0_17] : memref<1x4x8xf32, #tpu.memory_space<vmem>>, vector<1x4x8xf32>
      %25 = vector.shape_cast %24 : vector<1x4x8xf32> to vector<4x8xf32>
      %c0_18 = arith.constant 0 : index
      %c0_19 = arith.constant 0 : index
      %26 = vector.load %arg7[%c0_18, %c0_19] : memref<4x8xf32, #tpu.memory_space<vmem>>, vector<4x8xf32>
      %27 = arith.subf %26, %25 : vector<4x8xf32>
      %28 = math.absf %27 : vector<4x8xf32>
      %29 = vector.broadcast %23 : vector<1x8xf32> to vector<4x8xf32>
      %30 = arith.mulf %28, %29 : vector<4x8xf32>
      %cst_20 = arith.constant dense<0.000000e+00> : vector<8xf32>
      %31 = vector.multi_reduction <add>, %30, %cst_20 [0] : vector<4x8xf32> to vector<8xf32>
      %32 = vector.shape_cast %31 : vector<8xf32> to vector<1x8xf32>
      %c0_21 = arith.constant 0 : index
      %c0_22 = arith.constant 0 : index
      %c0_23 = arith.constant 0 : index
      %33 = vector.load %arg6[%c0_21, %c0_22, %c0_23] : memref<1x1x8xf32, #tpu.memory_space<vmem>>, vector<1x1x8xf32>
      %34 = vector.shape_cast %33 : vector<1x1x8xf32> to vector<1x8xf32>
      %35 = vector.shape_cast %32 : vector<1x8xf32> to vector<1x1x8xf32>
      tpu.vector_store %arg6[%c0_21, %c0_22, %c0_23], %35 {strides = array<i32>} : memref<1x1x8xf32, #tpu.memory_space<vmem>>, vector<1x1x8xf32>,
    } else {
    }
    return
  }
  func.func @transform_0(%arg0: i32, %arg1: i32) -> (i32, i32, i32) {
    %c0_i32 = arith.constant 0 : i32
    %c0_i32_0 = arith.constant 0 : i32
    %c0_i32_1 = arith.constant 0 : i32
    return %arg0, %c0_i32, %c0_i32_0 : i32, i32, i32
  }
  func.func @transform_1(%arg0: i32, %arg1: i32) -> (i32, i32, i32) {
    %c0_i32 = arith.constant 0 : i32
    %c0_i32_0 = arith.constant 0 : i32
    return %arg0, %c0_i32, %arg1 : i32, i32, i32
  }
  func.func @transform_2(%arg0: i32, %arg1: i32) -> (i32, i32, i32) {
    %c0_i32 = arith.constant 0 : i32
    %c0_i32_0 = arith.constant 0 : i32
    %c0_i32_1 = arith.constant 0 : i32
    return %arg0, %c0_i32, %c0_i32_0 : i32, i32, i32
  }
  func.func @transform_3(%arg0: i32, %arg1: i32) -> (i32, i32, i32) {
    %c0_i32 = arith.constant 0 : i32
    %c0_i32_0 = arith.constant 0 : i32
    %c0_i32_1 = arith.constant 0 : i32
    return %arg0, %c0_i32, %c0_i32_0 : i32, i32, i32
  }
  func.func @transform_4(%arg0: i32, %arg1: i32) -> (i32, i32, i32) {
    %c0_i32 = arith.constant 0 : i32
    %c0_i32_0 = arith.constant 0 : i32
    %c0_i32_1 = arith.constant 0 : i32
    return %arg0, %c0_i32, %c0_i32_0 : i32, i32, i32
  }
}

</mosaic_0001>

<llo_original>
// kernel: reg_l1_loss.1
$region0: #{reg_l1_loss.1}
  #allocation0 [shape = 'u32[]', space=smem, size = 0x4, offset = 0x4, fixed_abs, tag = 'smem constant byte address 0x4 - core index']
  #allocation1 [shape = 'u32[144,128]{1,0:T(1,128)}', space=vmem, size = 0x12000, scoped, tag = 'internal scratch']
  #allocation2 [shape = 'f32[4,8]{1,0:T(4,128)}', space=vmem, size = 0x800, scoped, tag = 'scratch operand']
  %s0 = inlined_call_operand.vmem [shape: s32[2,1,8], index: 0, kind: input, shape index: {}]
  %s1 = inlined_call_operand.vmem [shape: f32[2,4,256], index: 1, kind: input, shape index: {}]
  %s2 = inlined_call_operand.vmem [shape: f32[2,1,8], index: 2, kind: input, shape index: {}]
  %s3 = inlined_call_operand.vmem [shape: f32[2,4,8], index: 3, kind: input, shape index: {}]
  %s4 = inlined_call_operand.vmem [shape: f32[2,1,8], index: 4, kind: output, shape index: {}]
  %s5 = sld [smem:[#allocation0]]
  $region57: #{reg_l1_loss.1} parent=0
    _
  %s7 = ssub.s32 1, %s5
  %s8 = scalar_select 0, %s7, %s5
  loop: start=0, step=1, limit=4
  $region2: #{reg_l1_loss.1} parent=0 // loop_pre_header
    _
  $region3: #{reg_l1_loss.1} parent=0 // loop_header
    %s10 = sphi 0, %s14
    %p11 = scmp.ge.s32.totalorder %s10, 4
    %s17 = sphi 0, %s29
    %s18 = sphi 0, %s25
    %s19 = sphi 0, %s17
    %s20 = sphi 0, %s18
    %s21 = sphi 0, %s19
    %s22 = sphi 0, %s20
    %s32 = sphi 0, %s34
    %s35 = sphi 0, %s32
    %s36 = sphi 0, %s35
    %s52 = sphi 0, %s36
    %s60 = sphi 0, %s62
    %s63 = sphi 0, %s60
    %s64 = sphi 0, %s63
    %s80 = sphi 0, %s64
    %s86 = sphi 0, %s88
    %s89 = sphi 0, %s86
    %s90 = sphi 0, %s89
    %s106 = sphi 0, %s90
    %s112 = sphi 0, %s114
    %s115 = sphi 0, %s112
    %s116 = sphi 0, %s115
    %s132 = sphi 0, %s116
    %s138 = sphi 0, %s140
    %s141 = sphi 0, %s138
    %s142 = sphi 0, %s141
    %s158 = sphi 0, %s142
  $region4: #{reg_l1_loss.1} parent=0 // loop_header_branch
    %13 = sbr.rel (%p11) target = $region8
  $region5: #{reg_l1_loss.1} parent=0 // loop_body
    %s15 = ssub.s32 %s10, 1
    %s16 = ssub.s32 %s10, 2
    %s23 = sadd.s32 1, %s18
    %p24 = scmp.ge.s32.totalorder %s23, 1
    %s25 = scalar_select %p24, 0, %s23
    %s26 = sadd.s32 1, %s17
    %s27 = scalar_select %p24, %s26, %s17
    %p28 = scmp.ge.s32.totalorder %s27, 2
    %s29 = scalar_select %p28, 0, %s27
    %s30 = ssub.s32 %s17, %s29
    %p31 = scmp.eq.s32.totalorder %s30, 0
    %s33 = sadd.s32 %s32, 1
    %s34 = scalar_select %p31, %s32, %s33
    %p37 = pneg %p31
    %p38 = scmp.eq.s32.totalorder %s10, 1
    %p39 = por %p37, %p38
    %p40 = scmp.ne.s32.totalorder %s32, %s35
    %p41 = scmp.eq.s32.totalorder %s10, 0
    %p42 = por %p40, %p41
    %p43 = scmp.ne.s32.totalorder %s32, %s35
    %p44 = scmp.eq.s32.totalorder %s15, 1
    %p45 = por %p43, %p44
    %p46 = scmp.ne.s32.totalorder %s35, %s36
    %p47 = scmp.eq.s32.totalorder %s15, 0
    %p48 = por %p46, %p47
    %p49 = scmp.ne.s32.totalorder %s35, %s36
    %p50 = scmp.eq.s32.totalorder %s16, 1
    %p51 = por %p49, %p50
    %p53 = scmp.ne.s32.totalorder %s36, %s52
    %p54 = scmp.eq.s32.totalorder %s16, 0
    %p55 = por %p53, %p54
    %s56 = ssub.s32 %s17, %s29
    %s57 = ssub.s32 %s18, %s25
    %s58 = sor.u32 %s56, %s57
    %p59 = scmp.eq.s32.totalorder %s58, 0
    %s61 = sadd.s32 %s60, 1
    %s62 = scalar_select %p59, %s60, %s61
    %p65 = pneg %p59
    %p66 = scmp.eq.s32.totalorder %s10, 1
    %p67 = por %p65, %p66
    %p68 = scmp.ne.s32.totalorder %s60, %s63
    %p69 = scmp.eq.s32.totalorder %s10, 0
    %p70 = por %p68, %p69
    %p71 = scmp.ne.s32.totalorder %s60, %s63
    %p72 = scmp.eq.s32.totalorder %s15, 1
    %p73 = por %p71, %p72
    %p74 = scmp.ne.s32.totalorder %s63, %s64
    %p75 = scmp.eq.s32.totalorder %s15, 0
    %p76 = por %p74, %p75
    %p77 = scmp.ne.s32.totalorder %s63, %s64
    %p78 = scmp.eq.s32.totalorder %s16, 1
    %p79 = por %p77, %p78
    %p81 = scmp.ne.s32.totalorder %s64, %s80
    %p82 = scmp.eq.s32.totalorder %s16, 0
    %p83 = por %p81, %p82
    %s84 = ssub.s32 %s17, %s29
    %p85 = scmp.eq.s32.totalorder %s84, 0
    %s87 = sadd.s32 %s86, 1
    %s88 = scalar_select %p85, %s86, %s87
    %p91 = pneg %p85
    %p92 = scmp.eq.s32.totalorder %s10, 1
    %p93 = por %p91, %p92
    %p94 = scmp.ne.s32.totalorder %s86, %s89
    %p95 = scmp.eq.s32.totalorder %s10, 0
    %p96 = por %p94, %p95
    %p97 = scmp.ne.s32.totalorder %s86, %s89
    %p98 = scmp.eq.s32.totalorder %s15, 1
    %p99 = por %p97, %p98
    %p100 = scmp.ne.s32.totalorder %s89, %s90
    %p101 = scmp.eq.s32.totalorder %s15, 0
    %p102 = por %p100, %p101
    %p103 = scmp.ne.s32.totalorder %s89, %s90
    %p104 = scmp.eq.s32.totalorder %s16, 1
    %p105 = por %p103, %p104
    %p107 = scmp.ne.s32.totalorder %s90, %s106
    %p108 = scmp.eq.s32.totalorder %s16, 0
    %p109 = por %p107, %p108
    %s110 = ssub.s32 %s17, %s29
    %p111 = scmp.eq.s32.totalorder %s110, 0
    %s113 = sadd.s32 %s112, 1
    %s114 = scalar_select %p111, %s112, %s113
    %p117 = pneg %p111
    %p118 = scmp.eq.s32.totalorder %s10, 1
    %p119 = por %p117, %p118
    %p120 = scmp.ne.s32.totalorder %s112, %s115
    %p121 = scmp.eq.s32.totalorder %s10, 0
    %p122 = por %p120, %p121
    %p123 = scmp.ne.s32.totalorder %s112, %s115
    %p124 = scmp.eq.s32.totalorder %s15, 1
    %p125 = por %p123, %p124
    %p126 = scmp.ne.s32.totalorder %s115, %s116
    %p127 = scmp.eq.s32.totalorder %s15, 0
    %p128 = por %p126, %p127
    %p129 = scmp.ne.s32.totalorder %s115, %s116
    %p130 = scmp.eq.s32.totalorder %s16, 1
    %p131 = por %p129, %p130
    %p133 = scmp.ne.s32.totalorder %s116, %s132
    %p134 = scmp.eq.s32.totalorder %s16, 0
    %p135 = por %p133, %p134
    %s136 = ssub.s32 %s17, %s29
    %p137 = scmp.eq.s32.totalorder %s136, 0
    %s139 = sadd.s32 %s138, 1
    %s140 = scalar_select %p137, %s138, %s139
    %p143 = pneg %p137
    %p144 = scmp.eq.s32.totalorder %s10, 1
    %p145 = por %p143, %p144
    %p146 = scmp.ne.s32.totalorder %s138, %s141
    %p147 = scmp.eq.s32.totalorder %s10, 0
    %p148 = por %p146, %p147
    %p149 = scmp.ne.s32.totalorder %s138, %s141
    %p150 = scmp.eq.s32.totalorder %s15, 1
    %p151 = por %p149, %p150
    %p152 = scmp.ne.s32.totalorder %s141, %s142
    %p153 = scmp.eq.s32.totalorder %s15, 0
    %p154 = por %p152, %p153
    %p155 = scmp.ne.s32.totalorder %s141, %s142
    %p156 = scmp.eq.s32.totalorder %s16, 1
    %p157 = por %p155, %p156
    %p159 = scmp.ne.s32.totalorder %s142, %s158
    %p160 = scmp.eq.s32.totalorder %s16, 0
    %p161 = por %p159, %p160
    %p162 = scmp.le.s32.totalorder 1, %s10
    %p163 = scmp.lt.s32.totalorder %s10, 3
    %p164 = pnand %p162, %p163
    %p165 = pneg %p164
    // Predicated region
    $region9: #{reg_l1_loss.1} parent=5 // pred_check
      _
    $region10: #{reg_l1_loss.1} parent=5 // pred_check_branch
      %167 = sbr.rel (%p164) target = $region12
    $region11: #{reg_l1_loss.1} parent=5 // pred_region
      %s168 = ssub.s32 %s10, 1
    $region12: #{reg_l1_loss.1} parent=5 // pred_fallthru
      _
    %p169 = scmp.lt.s32.totalorder %s10, 2
    // Predicated region
    $region13: #{reg_l1_loss.1} parent=5 // pred_check
      %p170 = pneg %p169
    $region14: #{reg_l1_loss.1} parent=5 // pred_check_branch
      %172 = sbr.rel (%p170) target = $region16
    $region15: #{reg_l1_loss.1} parent=5 // pred_region
      // Predicated region
      $region17: #{reg_l1_loss.1} parent=15 // pred_check
        %p173 = pneg %p42
      $region18: #{reg_l1_loss.1} parent=15 // pred_check_branch
        %175 = sbr.rel (%p173) target = $region20
      $region19: #{reg_l1_loss.1} parent=15 // pred_region
        %p176 = scmp.lt.s32.totalorder %s17, 1
        %s177 = scalar_select %p176, %s17, 1
        %s178 = scalar_lea.vmem %s0, %s177
      $region20: #{reg_l1_loss.1} parent=15 // pred_fallthru
        _
      // Predicated region
      $region21: #{reg_l1_loss.1} parent=15 // pred_check
        %p179 = pneg %p70
      $region22: #{reg_l1_loss.1} parent=15 // pred_check_branch
        %181 = sbr.rel (%p179) target = $region24
      $region23: #{reg_l1_loss.1} parent=15 // pred_region
        %s182 = smul.u32 2, %s18
        %p183 = scmp.lt.s32.totalorder %s17, 1
        %s184 = scalar_select %p183, %s17, 1
        %p185 = scmp.lt.s32.totalorder %s182, 1
        %s186 = scalar_select %p185, %s182, 1
        %s187 = smul.addr %s184, 2
        %s188 = sadd.s32 %s186, %s187
        %s189 = smul.addr %s188, 4
        %s190 = scalar_lea.vmem %s1, %s189
        %s191 = smul.u32 2, %s18
      $region24: #{reg_l1_loss.1} parent=15 // pred_fallthru
        _
      // Predicated region
      $region25: #{reg_l1_loss.1} parent=15 // pred_check
        %p192 = pneg %p96
      $region26: #{reg_l1_loss.1} parent=15 // pred_check_branch
        %194 = sbr.rel (%p192) target = $region28
      $region27: #{reg_l1_loss.1} parent=15 // pred_region
        %p195 = scmp.lt.s32.totalorder %s17, 1
        %s196 = scalar_select %p195, %s17, 1
        %s197 = scalar_lea.vmem %s2, %s196
      $region28: #{reg_l1_loss.1} parent=15 // pred_fallthru
        _
      // Predicated region
      $region29: #{reg_l1_loss.1} parent=15 // pred_check
        %p198 = pneg %p122
      $region30: #{reg_l1_loss.1} parent=15 // pred_check_branch
        %200 = sbr.rel (%p198) target = $region32
      $region31: #{reg_l1_loss.1} parent=15 // pred_region
        %p201 = scmp.lt.s32.totalorder %s17, 1
        %s202 = scalar_select %p201, %s17, 1
        %s203 = smul.addr %s202, 4
        %s204 = scalar_lea.vmem %s3, %s203
      $region32: #{reg_l1_loss.1} parent=15 // pred_fallthru
        _
    $region16: #{reg_l1_loss.1} parent=5 // pred_fallthru
      _
    %p205 = scmp.le.s32.totalorder 1, %s10
    %p206 = scmp.lt.s32.totalorder %s10, 3
    %p207 = pnand %p205, %p206
    %p208 = pneg %p207
    // Predicated region
    $region33: #{reg_l1_loss.1} parent=5 // pred_check
      _
    $region34: #{reg_l1_loss.1} parent=5 // pred_check_branch
      %210 = sbr.rel (%p207) target = $region36
    $region35: #{reg_l1_loss.1} parent=5 // pred_region
      %s211 = ssub.s32 %s10, 1
      %p212 = scmp.lt.s32.totalorder %s19, 1
      %s213 = scalar_select %p212, %s19, 1
      %s214 = scalar_lea.vmem %s0, %s213
      %p215 = pneg %p48
      %p216 = pneg %p45
      %s217 = smul.u32 2, %s20
      %p218 = scmp.lt.s32.totalorder %s19, 1
      %s219 = scalar_select %p218, %s19, 1
      %p220 = scmp.lt.s32.totalorder %s217, 1
      %s221 = scalar_select %p220, %s217, 1
      %s222 = smul.addr %s219, 2
      %s223 = sadd.s32 %s221, %s222
      %s224 = smul.addr %s223, 4
      %s225 = scalar_lea.vmem %s1, %s224
      %p226 = pneg %p76
      %p227 = pneg %p73
      %p228 = scmp.lt.s32.totalorder %s19, 1
      %s229 = scalar_select %p228, %s19, 1
      %s230 = scalar_lea.vmem %s2, %s229
      %p231 = pneg %p102
      %p232 = pneg %p99
      %p233 = scmp.lt.s32.totalorder %s19, 1
      %s234 = scalar_select %p233, %s19, 1
      %s235 = smul.addr %s234, 4
      %s236 = scalar_lea.vmem %s3, %s235
      %p237 = pneg %p128
      %p238 = pneg %p125
      %p239 = pneg %p154
      %p240 = pneg %p151
      %p241 = scmp.lt.s32.totalorder %s19, 1
      %s242 = scalar_select %p241, %s19, 1
      %s243 = scalar_lea.vmem %s4, %s242
      %p244 = scmp.lt.s32.totalorder %s19, 1
      %s245 = scalar_select %p244, %s19, 1
      %s246 = scalar_lea.vmem %s0, %s245
      %s247 = smul.u32 2, %s20
      %p248 = scmp.lt.s32.totalorder %s19, 1
      %s249 = scalar_select %p248, %s19, 1
      %p250 = scmp.lt.s32.totalorder %s247, 1
      %s251 = scalar_select %p250, %s247, 1
      %s252 = smul.addr %s249, 2
      %s253 = sadd.s32 %s251, %s252
      %s254 = smul.addr %s253, 4
      %s255 = scalar_lea.vmem %s1, %s254
      %s256 = smul.u32 2, %s20
      %p257 = scmp.lt.s32.totalorder %s19, 1
      %s258 = scalar_select %p257, %s19, 1
      %s259 = scalar_lea.vmem %s2, %s258
      %p260 = scmp.lt.s32.totalorder %s19, 1
      %s261 = scalar_select %p260, %s19, 1
      %s262 = smul.addr %s261, 4
      %s263 = scalar_lea.vmem %s3, %s262
      %p264 = scmp.lt.s32.totalorder %s19, 1
      %s265 = scalar_select %p264, %s19, 1
      %s266 = scalar_lea.vmem %s4, %s265
      %p267 = scmp.eq.s32.totalorder %s20, 0
      // Predicated region
      $region37: #{reg_l1_loss.1} parent=35 // pred_check
        %p268 = pneg %p267
      $region38: #{reg_l1_loss.1} parent=35 // pred_check_branch
        %270 = sbr.rel (%p268) target = $region40
      $region39: #{reg_l1_loss.1} parent=35 // pred_region
        %vm271 = vcmask 60416
        %272 = vst.msk [vmem:[#allocation2] sm:$0xf] %vm271, 0.0
      $region40: #{reg_l1_loss.1} parent=35 // pred_fallthru
        _
      %v273 = vlaneseq
      %v274 = vshrl.u32 %v273, 7
      %v275 = vadd.s32 %v274, 8
      %v276 = vadd.s32 %v274, 16
      %v277 = vadd.s32 %v274, 24
      %v278 = vadd.s32 %v274, 32
      %v279 = vadd.s32 %v274, 40
      %v280 = vadd.s32 %v274, 48
      %v281 = vadd.s32 %v274, 56
      %v282 = vadd.s32 %v274, 64
      %v283 = vadd.s32 %v274, 72
      %v284 = vadd.s32 %v274, 80
      %v285 = vadd.s32 %v274, 88
      %v286 = vadd.s32 %v274, 96
      %v287 = vadd.s32 %v274, 104
      %v288 = vadd.s32 %v274, 112
      %v289 = vadd.s32 %v274, 120
      %v290 = vadd.s32 %v274, 128
      %v291 = vadd.s32 %v274, 136
      %v292 = vadd.s32 %v274, 144
      %v293 = vadd.s32 %v274, 152
      %v294 = vadd.s32 %v274, 160
      %v295 = vadd.s32 %v274, 168
      %v296 = vadd.s32 %v274, 176
      %v297 = vadd.s32 %v274, 184
      %v298 = vadd.s32 %v274, 192
      %v299 = vadd.s32 %v274, 200
      %v300 = vadd.s32 %v274, 208
      %v301 = vadd.s32 %v274, 216
      %v302 = vadd.s32 %v274, 224
      %v303 = vadd.s32 %v274, 232
      %v304 = vadd.s32 %v274, 240
      %v305 = vadd.s32 %v274, 248
      %v306 = vld [vmem:[%s246] sm:$0x1]
      %s307 = smul.u32 %s20, 256
      %v308 = vstv %s307
      %v309 = vsub.s32 %v306, %v308
      %v310 = vlaneseq
      %v311 = vshrl.u32 %v310, 7
      %v312 = vsub.s32 0, %v311
      %v313 = vrot.slane %v309, %v312
      %vm314 = vcmp.eq.s32.totalorder %v274, %v313
      %vm315 = vcmp.eq.s32.totalorder %v275, %v313
      %vm316 = vcmp.eq.s32.totalorder %v276, %v313
      %vm317 = vcmp.eq.s32.totalorder %v277, %v313
      %vm318 = vcmp.eq.s32.totalorder %v278, %v313
      %vm319 = vcmp.eq.s32.totalorder %v279, %v313
      %vm320 = vcmp.eq.s32.totalorder %v280, %v313
      %vm321 = vcmp.eq.s32.totalorder %v281, %v313
      %vm322 = vcmp.eq.s32.totalorder %v282, %v313
      %vm323 = vcmp.eq.s32.totalorder %v283, %v313
      %vm324 = vcmp.eq.s32.totalorder %v284, %v313
      %vm325 = vcmp.eq.s32.totalorder %v285, %v313
      %vm326 = vcmp.eq.s32.totalorder %v286, %v313
      %vm327 = vcmp.eq.s32.totalorder %v287, %v313
      %vm328 = vcmp.eq.s32.totalorder %v288, %v313
      %vm329 = vcmp.eq.s32.totalorder %v289, %v313
      %vm330 = vcmp.eq.s32.totalorder %v290, %v313
      %vm331 = vcmp.eq.s32.totalorder %v291, %v313
      %vm332 = vcmp.eq.s32.totalorder %v292, %v313
      %vm333 = vcmp.eq.s32.totalorder %v293, %v313
      %vm334 = vcmp.eq.s32.totalorder %v294, %v313
      %vm335 = vcmp.eq.s32.totalorder %v295, %v313
      %vm336 = vcmp.eq.s32.totalorder %v296, %v313
      %vm337 = vcmp.eq.s32.totalorder %v297, %v313
      %vm338 = vcmp.eq.s32.totalorder %v298, %v313
      %vm339 = vcmp.eq.s32.totalorder %v299, %v313
      %vm340 = vcmp.eq.s32.totalorder %v300, %v313
      %vm341 = vcmp.eq.s32.totalorder %v301, %v313
      %vm342 = vcmp.eq.s32.totalorder %v302, %v313
      %vm343 = vcmp.eq.s32.totalorder %v303, %v313
      %vm344 = vcmp.eq.s32.totalorder %v304, %v313
      %vm345 = vcmp.eq.s32.totalorder %v305, %v313
      %v346 = vsel %vm314, 1, 0
      %v347 = vsel %vm315, 1, 0
      %v348 = vsel %vm316, 1, 0
      %v349 = vsel %vm317, 1, 0
      %v350 = vsel %vm318, 1, 0
      %v351 = vsel %vm319, 1, 0
      %v352 = vsel %vm320, 1, 0
      %v353 = vsel %vm321, 1, 0
      %v354 = vsel %vm322, 1, 0
      %v355 = vsel %vm323, 1, 0
      %v356 = vsel %vm324, 1, 0
      %v357 = vsel %vm325, 1, 0
      %v358 = vsel %vm326, 1, 0
      %v359 = vsel %vm327, 1, 0
      %v360 = vsel %vm328, 1, 0
      %v361 = vsel %vm329, 1, 0
      %v362 = vsel %vm330, 1, 0
      %v363 = vsel %vm331, 1, 0
      %v364 = vsel %vm332, 1, 0
      %v365 = vsel %vm333, 1, 0
      %v366 = vsel %vm334, 1, 0
      %v367 = vsel %vm335, 1, 0
      %v368 = vsel %vm336, 1, 0
      %v369 = vsel %vm337, 1, 0
      %v370 = vsel %vm338, 1, 0
      %v371 = vsel %vm339, 1, 0
      %v372 = vsel %vm340, 1, 0
      %v373 = vsel %vm341, 1, 0
      %v374 = vsel %vm342, 1, 0
      %v375 = vsel %vm343, 1, 0
      %v376 = vsel %vm344, 1, 0
      %v377 = vsel %vm345, 1, 0
      %v378 = vcvt.s32.f32 %v346
      %v379 = vcvt.s32.f32 %v347
      %v380 = vcvt.s32.f32 %v348
      %v381 = vcvt.s32.f32 %v349
      %v382 = vcvt.s32.f32 %v350
      %v383 = vcvt.s32.f32 %v351
      %v384 = vcvt.s32.f32 %v352
      %v385 = vcvt.s32.f32 %v353
      %v386 = vcvt.s32.f32 %v354
      %v387 = vcvt.s32.f32 %v355
      %v388 = vcvt.s32.f32 %v356
      %v389 = vcvt.s32.f32 %v357
      %v390 = vcvt.s32.f32 %v358
      %v391 = vcvt.s32.f32 %v359
      %v392 = vcvt.s32.f32 %v360
      %v393 = vcvt.s32.f32 %v361
      %v394 = vcvt.s32.f32 %v362
      %v395 = vcvt.s32.f32 %v363
      %v396 = vcvt.s32.f32 %v364
      %v397 = vcvt.s32.f32 %v365
      %v398 = vcvt.s32.f32 %v366
      %v399 = vcvt.s32.f32 %v367
      %v400 = vcvt.s32.f32 %v368
      %v401 = vcvt.s32.f32 %v369
      %v402 = vcvt.s32.f32 %v370
      %v403 = vcvt.s32.f32 %v371
      %v404 = vcvt.s32.f32 %v372
      %v405 = vcvt.s32.f32 %v373
      %v406 = vcvt.s32.f32 %v374
      %v407 = vcvt.s32.f32 %v375
      %v408 = vcvt.s32.f32 %v376
      %v409 = vcvt.s32.f32 %v377
      %v410 = vld [vmem:[#allocation2] sm:$0xf]
      %v411 = vld [vmem:[%s255] sm:$0xff]
      %v413 = vcombine.high %v411, %v411
      %415 = vmatprep.subr.mxu0 0.0
      %416 = vmatpush1.msra.mxu0 %v378
      %417 = vmatprep.subr.mxu0 0.0
      %418 = vmatpush1.msra.mxu0 %v379
      %419 = vmatprep.subr.mxu0 0.0
      %420 = vmatpush1.msra.mxu0 %v380
      %421 = vmatprep.subr.mxu0 0.0
      %422 = vmatpush1.msra.mxu0 %v381
      %423 = vmatprep.subr.mxu0 0.0
      %424 = vmatpush1.msra.mxu0 %v382
      %425 = vmatprep.subr.mxu0 0.0
      %426 = vmatpush1.msra.mxu0 %v383
      %427 = vmatprep.subr.mxu0 0.0
      %428 = vmatpush1.msra.mxu0 %v384
      %429 = vmatprep.subr.mxu0 0.0
      %430 = vmatpush1.msra.mxu0 %v385
      %431 = vmatprep.subr.mxu0 0.0
      %432 = vmatpush1.msra.mxu0 %v386
      %433 = vmatprep.subr.mxu0 0.0
      %434 = vmatpush1.msra.mxu0 %v387
      %435 = vmatprep.subr.mxu0 0.0
      %436 = vmatpush1.msra.mxu0 %v388
      %437 = vmatprep.subr.mxu0 0.0
      %438 = vmatpush1.msra.mxu0 %v389
      %439 = vmatprep.subr.mxu0 0.0
      %440 = vmatpush1.msra.mxu0 %v390
      %441 = vmatprep.subr.mxu0 0.0
      %442 = vmatpush1.msra.mxu0 %v391
      %443 = vmatprep.subr.mxu0 0.0
      %444 = vmatpush1.msra.mxu0 %v392
      %445 = vmatprep.subr.mxu0 0.0
      %446 = vmatpush1.msra.mxu0 %v393
      %447 = vmatprep.subr.mxu0 0.0
      %448 = vmatpush1.msra.mxu0 %v394
      %449 = vmatprep.subr.mxu0 0.0
      %450 = vmatpush1.msra.mxu0 %v395
      %451 = vmatprep.subr.mxu0 0.0
      %452 = vmatpush1.msra.mxu0 %v396
      %453 = vmatprep.subr.mxu0 0.0
      %454 = vmatpush1.msra.mxu0 %v397
      %455 = vmatprep.subr.mxu0 0.0
      %456 = vmatpush1.msra.mxu0 %v398
      %457 = vmatprep.subr.mxu0 0.0
      %458 = vmatpush1.msra.mxu0 %v399
      %459 = vmatprep.subr.mxu0 0.0
      %460 = vmatpush1.msra.mxu0 %v400
      %461 = vmatprep.subr.mxu0 0.0
      %462 = vmatpush1.msra.mxu0 %v401
      %463 = vmatprep.subr.mxu0 0.0
      %464 = vmatpush1.msra.mxu0 %v402
      %465 = vmatprep.subr.mxu0 0.0
      %466 = vmatpush1.msra.mxu0 %v403
      %467 = vmatprep.subr.mxu0 0.0
      %468 = vmatpush1.msra.mxu0 %v404
      %469 = vmatprep.subr.mxu0 0.0
      %470 = vmatpush1.msra.mxu0 %v405
      %471 = vmatprep.subr.mxu0 0.0
      %472 = vmatpush1.msra.mxu0 %v406
      %473 = vmatprep.subr.mxu0 0.0
      %474 = vmatpush1.msra.mxu0 %v407
      %475 = vmatprep.subr.mxu0 0.0
      %476 = vmatpush1.msra.mxu0 %v408
      %477 = vmatprep.subr.mxu0 0.0
      %478 = vmatpush1.msra.mxu0 %v409
      %479 = vmatprep.mubr.f32.mxu0 %v413
      %480 = vmatmul.mubr.f32.gmra.mrb[0].mxu0 %v411
      %v481 = vpop.f32.mrb[0].mxu0
      %v482 = vadd.f32 0.0, %v481
      %v483 = vpop.f32.mrb[0].mxu0
      %484 = vdwg.mxu0
      %v485 = vadd.f32 %v410, %v482
      %vm486 = vcmask 60416
      %487 = vst.msk [vmem:[#allocation2] sm:$0xf] %vm486, %v485
      // Predicated region
      $region41: #{reg_l1_loss.1} parent=35 // pred_check
        %p488 = pneg %p267
      $region42: #{reg_l1_loss.1} parent=35 // pred_check_branch
        %490 = sbr.rel (%p488) target = $region44
      $region43: #{reg_l1_loss.1} parent=35 // pred_region
        %v491 = vld [vmem:[%s259] sm:$0x1]
        %v492 = vld [vmem:[%s263] sm:$0xf]
        %v493 = vld [vmem:[#allocation2] sm:$0xf]
        %v494 = vsub.f32 %v493, %v492
        %v495 = vand.u32 2147483647, %v494
        %v497 = vlaneseq
        %v498 = vshrl.u32 %v497, 7
        %v499 = vsub.s32 0, %v498
        %v500 = vrot.slane %v491, %v499
        %v502 = vmul.f32 %v495, %v500
        %v503 = vsel %vm486, %v502, 0.0
        %v504 = vrot.slane %v503, 4
        %v505 = vadd.f32 %v503, %v504
        %v506 = vrot.slane %v505, 2
        %v507 = vadd.f32 %v505, %v506
        %v508 = vrot.slane %v507, 1
        %v509 = vadd.f32 %v507, %v508
        %vm510 = vcmask 57344
        %511 = vst.msk [vmem:[%s266] sm:$0x1] %vm510, %v509
      $region44: #{reg_l1_loss.1} parent=35 // pred_fallthru
        _
      %p512 = scmp.lt.s32.totalorder %s19, 1
      %s513 = scalar_select %p512, %s19, 1
      %s514 = scalar_lea.vmem %s4, %s513
      // Predicated region
      $region45: #{reg_l1_loss.1} parent=35 // pred_check
        %p515 = pneg %p151
      $region46: #{reg_l1_loss.1} parent=35 // pred_check_branch
        %517 = sbr.rel (%p515) target = $region48
      $region47: #{reg_l1_loss.1} parent=35 // pred_region
        _
      $region48: #{reg_l1_loss.1} parent=35 // pred_fallthru
        _
    $region36: #{reg_l1_loss.1} parent=5 // pred_fallthru
      _
    %p518 = scmp.le.s32.totalorder 2, %s10
    // Predicated region
    $region49: #{reg_l1_loss.1} parent=5 // pred_check
      %p519 = pneg %p518
    $region50: #{reg_l1_loss.1} parent=5 // pred_check_branch
      %521 = sbr.rel (%p519) target = $region52
    $region51: #{reg_l1_loss.1} parent=5 // pred_region
      %s522 = ssub.s32 %s10, 2
      // Predicated region
      $region53: #{reg_l1_loss.1} parent=51 // pred_check
        %p523 = pneg %p157
      $region54: #{reg_l1_loss.1} parent=51 // pred_check_branch
        %525 = sbr.rel (%p523) target = $region56
      $region55: #{reg_l1_loss.1} parent=51 // pred_region
        %p526 = scmp.lt.s32.totalorder %s21, 1
        %s527 = scalar_select %p526, %s21, 1
        %s528 = scalar_lea.vmem %s4, %s527
      $region56: #{reg_l1_loss.1} parent=51 // pred_fallthru
        _
    $region52: #{reg_l1_loss.1} parent=5 // pred_fallthru
      _
  $region6: #{reg_l1_loss.1} parent=0 // loop_footer
    %s14 = sadd.s32 1, %s10
  $region7: #{reg_l1_loss.1} parent=0 // loop_footer_branch
    %9 = sbr.rel target = $region3
  $region8: #{reg_l1_loss.1} parent=0 // loop_exit
    _

</llo_original>
